<compile_context>
chip_gen: v6e
topology: v6e:2x2x1
jax: 0.10.0
libtpu: 0.0.40
codegen_flags: <defaults>
</compile_context>

<pallas_src>
import functools

import jax
import jax.numpy as jnp
from jax import lax
from jax.experimental import pallas as pl
from jax.experimental.pallas import tpu as pltpu

# --- small, module-consistent sizes for the runnable example -----------------
BATCH = 2
INPUT_DIM = 8 * 8 * 3        # module uses 32*32*3; scaled down, same structure
HIDDEN_DIM = 32              # module uses 100
OUTPUT_DIM = 10
HIDDEN_LAYER_NUM = 6         # module uses 100 -> (HIDDEN_LAYER_NUM - 1) hidden layers

LANE = 128
SUBLANE = 8
MAX_TILE_B = 512             # streamed LHS rows per grid step (not MXU width)
HIDDEN_UNROLL = 4            # modest unroll of the serial hidden-layer chain


def _round_up(x, m):
    return (x + m - 1) // m * m


def _mlp_kernel(x_ref, w_in_ref, b_in_ref, w_hid_ref, b_hid_ref,
                w_out_ref, b_out_ref, out_ref, *, n_hidden):
    """One batch tile: full forward pass (bf16 MXU matmuls, f32 softmax)."""
    # input layer: (TB, K) bf16 @ (K, H) bf16 -> f32 accumulate
    x = x_ref[...].astype(jnp.bfloat16)        # cast in-kernel; x ships as f32
    h = jnp.dot(x, w_in_ref[...],
                preferred_element_type=jnp.float32) + b_in_ref[...]

    def layer(l, h):
        # dynamic index into the resident weight stack (leading axis)
        return jnp.dot(h.astype(jnp.bfloat16), w_hid_ref[l],
                       preferred_element_type=jnp.float32) + b_hid_ref[l]

    # Serial hidden chain as a fori_loop with a modest manual unroll: bounds
    # live ranges (no ~99-layer straight-line block / vreg spills) while the
    # chain stays a dependent MXU sequence either way.
    n_main = (n_hidden // HIDDEN_UNROLL) * HIDDEN_UNROLL
    if n_main > 0:
        def unrolled_body(i, h):
            base = i * HIDDEN_UNROLL
            for u in range(HIDDEN_UNROLL):
                h = layer(base + u, h)
            return h
        h = lax.fori_loop(0, n_main // HIDDEN_UNROLL, unrolled_body, h)
    for l in range(n_main, n_hidden):          # static remainder (< UNROLL)
        h = layer(l, h)

    # Output layer; padded lanes of b_out were pre-filled with -1e30 in the
    # wrapper (padded w_out columns are zero), so no in-kernel lane mask is
    # needed and the store stays a lane-dense 128-wide slab.
    logits = jnp.dot(h.astype(jnp.bfloat16), w_out_ref[...],
                     preferred_element_type=jnp.float32) + b_out_ref[...]

    m = jnp.max(logits, axis=1, keepdims=True)
    e = jnp.exp(logits - m)
    # Exact reciprocal keeps the row-sum==1 check at 1e-5; approx=True is an
    # EUP freebie but not worth loosening normalization for one recip/tile.
    out_ref[...] = e * pl.reciprocal(jnp.sum(e, axis=1, keepdims=True),
                                     approx=False)


def _pad2(a, rows, cols, value=0.0):
    return jnp.pad(a, ((0, rows - a.shape[0]), (0, cols - a.shape[1])),
                   constant_values=value)


def _const_spec(block_shape, index_map):
    """BlockSpec for weights/biases with constant index_maps.

    They are DMA'd exactly once, so the default second pipeline buffer is pure
    VMEM waste; request single-buffering when this JAX exposes pipeline_mode.
    """
    if hasattr(pl, "Buffered"):
        try:
            return pl.BlockSpec(block_shape, index_map,
                                pipeline_mode=pl.Buffered(1))
        except TypeError:
            pass
    return pl.BlockSpec(block_shape, index_map)


def _pick_batch_tiling(batch):
    """Batch tile: large enough to amortize MXU fill/drain and per-grid-step
    overhead, capped at 512 so the double-buffered f32 x tile fits scoped VMEM
    on v5e at real scale, and split into >=2 grid steps whenever batch permits
    so the "parallel" batch axis can shard across v7x's two TensorCores."""
    b_min = _round_up(batch, SUBLANE)
    tile = min(MAX_TILE_B, b_min)
    if b_min >= 2 * SUBLANE:
        tile = min(tile, _round_up(b_min // 2, SUBLANE))
    tile = max(SUBLANE, _round_up(tile, SUBLANE))
    b_pad = _round_up(batch, tile)
    return tile, b_pad


@jax.jit
def feedforward_forward(x, w_in, b_in, w_hid, b_hid, w_out, b_out):
    """x: (B, input_dim) f32. Weights in (in, out) layout (pre-transposed)."""
    batch, in_dim = x.shape
    n_hidden, hid_dim, _ = w_hid.shape
    out_dim = w_out.shape[1]

    k_pad = _round_up(in_dim, LANE)
    h_pad = _round_up(hid_dim, LANE)
    o_pad = _round_up(out_dim, LANE)
    tile_b, b_pad = _pick_batch_tiling(batch)

    # x stays f32 (cast to bf16 inside the kernel); skip the pad entirely when
    # batch / input_dim are already aligned (true at the real 3072-wide scale).
    xp = x if (batch == b_pad and in_dim == k_pad) else _pad2(x, b_pad, k_pad)

    # Weights padded to (8,128)-granular tiles; matmul operands bf16, biases
    # f32.  (In a training loop these pads would be hoisted out of the step.)
    w_in_p = _pad2(w_in, k_pad, h_pad).astype(jnp.bfloat16)
    b_in_p = _pad2(b_in, 1, h_pad)
    w_hid_p = jnp.pad(w_hid, ((0, 0), (0, h_pad - hid_dim),
                              (0, h_pad - hid_dim))).astype(jnp.bfloat16)
    b_hid_p = jnp.pad(b_hid, ((0, 0), (0, 0), (0, h_pad - hid_dim)))
    w_out_p = _pad2(w_out, h_pad, o_pad).astype(jnp.bfloat16)
    # Bake the lane mask into the bias: padded lanes' logits become -1e30.
    b_out_p = _pad2(b_out, 1, o_pad, value=-1e30)

    kernel = functools.partial(_mlp_kernel, n_hidden=n_hidden)

    out_padded = pl.pallas_call(
        kernel,
        out_shape=jax.ShapeDtypeStruct((b_pad, o_pad), jnp.float32),
        grid=(b_pad // tile_b,),
        in_specs=[
            pl.BlockSpec((tile_b, k_pad), lambda b: (b, 0)),              # x
            _const_spec((k_pad, h_pad), lambda b: (0, 0)),                # w_in
            _const_spec((1, h_pad), lambda b: (0, 0)),                    # b_in
            _const_spec((n_hidden, h_pad, h_pad), lambda b: (0, 0, 0)),   # w_hid
            _const_spec((n_hidden, 1, h_pad), lambda b: (0, 0, 0)),       # b_hid
            _const_spec((h_pad, o_pad), lambda b: (0, 0)),                # w_out
            _const_spec((1, o_pad), lambda b: (0, 0)),                    # b_out
        ],
        out_specs=pl.BlockSpec((tile_b, o_pad), lambda b: (b, 0)),
        compiler_params=pltpu.CompilerParams(
            dimension_semantics=("parallel",),
            vmem_limit_bytes=32 * 1024 * 1024),
    )(xp, w_in_p, b_in_p, w_hid_p, b_hid_p, w_out_p, b_out_p)

    return out_padded[:batch, :out_dim]


def init_params(key):
    """Deterministic init mimicking PyTorch nn.Linear (uniform +/- 1/sqrt(fan_in))."""
    ks = jax.random.split(key, 6)
    n_hidden = HIDDEN_LAYER_NUM - 1

    def u(k, shape, fan_in):
        bound = 1.0 / jnp.sqrt(jnp.float32(fan_in))
        return jax.random.uniform(k, shape, jnp.float32, -bound, bound)

    # stored as (in, out) — already transposed relative to PyTorch's (out, in)
    w_in = u(ks[0], (INPUT_DIM, HIDDEN_DIM), INPUT_DIM)
    b_in = u(ks[1], (1, HIDDEN_DIM), INPUT_DIM)
    w_hid = u(ks[2], (n_hidden, HIDDEN_DIM, HIDDEN_DIM), HIDDEN_DIM)
    b_hid = u(ks[3], (n_hidden, 1, HIDDEN_DIM), HIDDEN_DIM)
    w_out = u(ks[4], (HIDDEN_DIM, OUTPUT_DIM), HIDDEN_DIM)
    b_out = u(ks[5], (1, OUTPUT_DIM), HIDDEN_DIM)
    return w_in, b_in, w_hid, b_hid, w_out, b_out


def reference_forward(x, w_in, b_in, w_hid, b_hid, w_out, b_out):
    """Pure-f32 reference matching the PyTorch module's forward."""
    h = x @ w_in + b_in
    for l in range(w_hid.shape[0]):
        h = h @ w_hid[l] + b_hid[l]
    logits = h @ w_out + b_out
    return jax.nn.softmax(logits, axis=1)


if __name__ == "__main__":
    key = jax.random.PRNGKey(0)
    k_x1, k_x2, k_p = jax.random.split(key, 3)
    params = init_params(k_p)

    # Case 1: tiny batch (single grid step, padded batch rows + padded K).
    x1 = jax.random.normal(k_x1, (BATCH, INPUT_DIM), jnp.float32)
    out1 = jax.block_until_ready(feedforward_forward(x1, *params))
    ref1 = reference_forward(x1, *params)
    assert out1.shape == (BATCH, OUTPUT_DIM)
    # bf16 matmul inputs vs. the pure-f32 reference -> loose elementwise tol.
    assert jnp.allclose(out1, ref1, atol=2e-2), (
        f"max abs err {jnp.max(jnp.abs(out1 - ref1))}")
    assert jnp.allclose(jnp.sum(out1, axis=1), 1.0, atol=1e-5)

    # Case 2: batch not a tile multiple -> >=2 grid steps + trailing pad rows.
    x2 = jax.random.normal(k_x2, (40, INPUT_DIM), jnp.float32)
    out2 = jax.block_until_ready(feedforward_forward(x2, *params))
    ref2 = reference_forward(x2, *params)
    assert out2.shape == (40, OUTPUT_DIM)
    assert jnp.allclose(out2, ref2, atol=2e-2), (
        f"max abs err {jnp.max(jnp.abs(out2 - ref2))}")
    assert jnp.allclose(jnp.sum(out2, axis=1), 1.0, atol=1e-5)

    print("KERNEL_OK")
</pallas_src>

<mosaic_0001>
module attributes {stable_mosaic.version = 11 : i64} {
  func.func @_mlp_kernel(%arg0: i32, %arg1: memref<8x256xf32, #tpu.memory_space<vmem>>, %arg2: memref<256x128xbf16, #tpu.memory_space<vmem>>, %arg3: memref<1x128xf32, #tpu.memory_space<vmem>>, %arg4: memref<5x128x128xbf16, #tpu.memory_space<vmem>>, %arg5: memref<5x1x128xf32, #tpu.memory_space<vmem>>, %arg6: memref<128x128xbf16, #tpu.memory_space<vmem>>, %arg7: memref<1x128xf32, #tpu.memory_space<vmem>>, %arg8: memref<8x128xf32, #tpu.memory_space<vmem>>) attributes {dimension_semantics = [#tpu.dimension_semantics<parallel>], iteration_bounds = array<i64: 1>, scalar_prefetch = 0 : i64, scratch_operands = 0 : i64, tpu.core_type = #tpu.core_type<tc>, window_params = [{transform_indices = @transform_0, window_bounds = array<i64: 8, 256>}, {pipeline_mode = #tpu.pipeline_mode<synchronous>, transform_indices = @transform_1, window_bounds = array<i64: 256, 128>}, {pipeline_mode = #tpu.pipeline_mode<synchronous>, transform_indices = @transform_2, window_bounds = array<i64: 1, 128>}, {pipeline_mode = #tpu.pipeline_mode<synchronous>, transform_indices = @transform_3, window_bounds = array<i64: 5, 128, 128>}, {pipeline_mode = #tpu.pipeline_mode<synchronous>, transform_indices = @transform_4, window_bounds = array<i64: 5, 1, 128>}, {pipeline_mode = #tpu.pipeline_mode<synchronous>, transform_indices = @transform_5, window_bounds = array<i64: 128, 128>}, {pipeline_mode = #tpu.pipeline_mode<synchronous>, transform_indices = @transform_6, window_bounds = array<i64: 1, 128>}, {transform_indices = @transform_7, window_bounds = array<i64: 8, 128>}]} {
    %c0 = arith.constant 0 : index
    %c0_0 = arith.constant 0 : index
    %0 = vector.load %arg1[%c0, %c0_0] : memref<8x256xf32, #tpu.memory_space<vmem>>, vector<8x256xf32>
    %1 = arith.truncf %0 : vector<8x256xf32> to vector<8x256xbf16>
    %c0_1 = arith.constant 0 : index
    %c0_2 = arith.constant 0 : index
    %2 = vector.load %arg2[%c0_1, %c0_2] : memref<256x128xbf16, #tpu.memory_space<vmem>>, vector<256x128xbf16>
    %cst = arith.constant dense<0.000000e+00> : vector<8x128xf32>
    %3 = tpu.matmul %1, %2, %cst {dimension_numbers = #tpu.dot_dimension_numbers<[1], [0], [0], [1], [0, 0, 1, 1], [], []>} : vector<8x256xbf16>, vector<256x128xbf16>, vector<8x128xf32> -> vector<8x128xf32>
    %c0_3 = arith.constant 0 : index
    %c0_4 = arith.constant 0 : index
    %4 = vector.load %arg3[%c0_3, %c0_4] : memref<1x128xf32, #tpu.memory_space<vmem>>, vector<1x128xf32>
    %5 = vector.broadcast %4 : vector<1x128xf32> to vector<8x128xf32>
    %6 = arith.addf %3, %5 : vector<8x128xf32>
    %c0_i32 = arith.constant 0 : i32
    %c4_i32 = arith.constant 4 : i32
    %7 = arith.muli %c0_i32, %c4_i32 : i32
    %c0_i32_5 = arith.constant 0 : i32
    %8 = arith.addi %7, %c0_i32_5 : i32
    %9 = arith.truncf %6 : vector<8x128xf32> to vector<8x128xbf16>
    %10 = arith.index_cast %8 : i32 to index
    %c0_6 = arith.constant 0 : index
    %c0_7 = arith.constant 0 : index
    %11 = vector.load %arg4[%10, %c0_6, %c0_7] : memref<5x128x128xbf16, #tpu.memory_space<vmem>>, vector<1x128x128xbf16>
    %12 = vector.shape_cast %11 : vector<1x128x128xbf16> to vector<128x128xbf16>
    %cst_8 = arith.constant dense<0.000000e+00> : vector<8x128xf32>
    %13 = tpu.matmul %9, %12, %cst_8 {dimension_numbers = #tpu.dot_dimension_numbers<[1], [0], [0], [1], [0, 0, 1, 1], [], []>} : vector<8x128xbf16>, vector<128x128xbf16>, vector<8x128xf32> -> vector<8x128xf32>
    %14 = arith.index_cast %8 : i32 to index
    %c0_9 = arith.constant 0 : index
    %c0_10 = arith.constant 0 : index
    %15 = vector.load %arg5[%14, %c0_9, %c0_10] : memref<5x1x128xf32, #tpu.memory_space<vmem>>, vector<1x1x128xf32>
    %16 = vector.shape_cast %15 : vector<1x1x128xf32> to vector<1x128xf32>
    %17 = vector.broadcast %16 : vector<1x128xf32> to vector<8x128xf32>
    %18 = arith.addf %13, %17 : vector<8x128xf32>
    %c1_i32 = arith.constant 1 : i32
    %19 = arith.addi %7, %c1_i32 : i32
    %20 = arith.truncf %18 : vector<8x128xf32> to vector<8x128xbf16>
    %21 = arith.index_cast %19 : i32 to index
    %c0_11 = arith.constant 0 : index
    %c0_12 = arith.constant 0 : index
    %22 = vector.load %arg4[%21, %c0_11, %c0_12] : memref<5x128x128xbf16, #tpu.memory_space<vmem>>, vector<1x128x128xbf16>
    %23 = vector.shape_cast %22 : vector<1x128x128xbf16> to vector<128x128xbf16>
    %cst_13 = arith.constant dense<0.000000e+00> : vector<8x128xf32>
    %24 = tpu.matmul %20, %23, %cst_13 {dimension_numbers = #tpu.dot_dimension_numbers<[1], [0], [0], [1], [0, 0, 1, 1], [], []>} : vector<8x128xbf16>, vector<128x128xbf16>, vector<8x128xf32> -> vector<8x128xf32>
    %25 = arith.index_cast %19 : i32 to index
    %c0_14 = arith.constant 0 : index
    %c0_15 = arith.constant 0 : index
    %26 = vector.load %arg5[%25, %c0_14, %c0_15] : memref<5x1x128xf32, #tpu.memory_space<vmem>>, vector<1x1x128xf32>
    %27 = vector.shape_cast %26 : vector<1x1x128xf32> to vector<1x128xf32>
    %28 = vector.broadcast %27 : vector<1x128xf32> to vector<8x128xf32>
    %29 = arith.addf %24, %28 : vector<8x128xf32>
    %c2_i32 = arith.constant 2 : i32
    %30 = arith.addi %7, %c2_i32 : i32
    %31 = arith.truncf %29 : vector<8x128xf32> to vector<8x128xbf16>
    %32 = arith.index_cast %30 : i32 to index
    %c0_16 = arith.constant 0 : index
    %c0_17 = arith.constant 0 : index
    %33 = vector.load %arg4[%32, %c0_16, %c0_17] : memref<5x128x128xbf16, #tpu.memory_space<vmem>>, vector<1x128x128xbf16>
    %34 = vector.shape_cast %33 : vector<1x128x128xbf16> to vector<128x128xbf16>
    %cst_18 = arith.constant dense<0.000000e+00> : vector<8x128xf32>
    %35 = tpu.matmul %31, %34, %cst_18 {dimension_numbers = #tpu.dot_dimension_numbers<[1], [0], [0], [1], [0, 0, 1, 1], [], []>} : vector<8x128xbf16>, vector<128x128xbf16>, vector<8x128xf32> -> vector<8x128xf32>
    %36 = arith.index_cast %30 : i32 to index
    %c0_19 = arith.constant 0 : index
    %c0_20 = arith.constant 0 : index
    %37 = vector.load %arg5[%36, %c0_19, %c0_20] : memref<5x1x128xf32, #tpu.memory_space<vmem>>, vector<1x1x128xf32>
    %38 = vector.shape_cast %37 : vector<1x1x128xf32> to vector<1x128xf32>
    %39 = vector.broadcast %38 : vector<1x128xf32> to vector<8x128xf32>
    %40 = arith.addf %35, %39 : vector<8x128xf32>
    %c3_i32 = arith.constant 3 : i32
    %41 = arith.addi %7, %c3_i32 : i32
    %42 = arith.truncf %40 : vector<8x128xf32> to vector<8x128xbf16>
    %43 = arith.index_cast %41 : i32 to index
    %c0_21 = arith.constant 0 : index
    %c0_22 = arith.constant 0 : index
    %44 = vector.load %arg4[%43, %c0_21, %c0_22] : memref<5x128x128xbf16, #tpu.memory_space<vmem>>, vector<1x128x128xbf16>
    %45 = vector.shape_cast %44 : vector<1x128x128xbf16> to vector<128x128xbf16>
    %cst_23 = arith.constant dense<0.000000e+00> : vector<8x128xf32>
    %46 = tpu.matmul %42, %45, %cst_23 {dimension_numbers = #tpu.dot_dimension_numbers<[1], [0], [0], [1], [0, 0, 1, 1], [], []>} : vector<8x128xbf16>, vector<128x128xbf16>, vector<8x128xf32> -> vector<8x128xf32>
    %47 = arith.index_cast %41 : i32 to index
    %c0_24 = arith.constant 0 : index
    %c0_25 = arith.constant 0 : index
    %48 = vector.load %arg5[%47, %c0_24, %c0_25] : memref<5x1x128xf32, #tpu.memory_space<vmem>>, vector<1x1x128xf32>
    %49 = vector.shape_cast %48 : vector<1x1x128xf32> to vector<1x128xf32>
    %50 = vector.broadcast %49 : vector<1x128xf32> to vector<8x128xf32>
    %51 = arith.addf %46, %50 : vector<8x128xf32>
    %c1_i32_26 = arith.constant 1 : i32
    %52 = arith.truncf %51 : vector<8x128xf32> to vector<8x128xbf16>
    %c4 = arith.constant 4 : index
    %c0_27 = arith.constant 0 : index
    %c0_28 = arith.constant 0 : index
    %53 = vector.load %arg4[%c4, %c0_27, %c0_28] : memref<5x128x128xbf16, #tpu.memory_space<vmem>>, vector<1x128x128xbf16>
    %54 = vector.shape_cast %53 : vector<1x128x128xbf16> to vector<128x128xbf16>
    %cst_29 = arith.constant dense<0.000000e+00> : vector<8x128xf32>
    %55 = tpu.matmul %52, %54, %cst_29 {dimension_numbers = #tpu.dot_dimension_numbers<[1], [0], [0], [1], [0, 0, 1, 1], [], []>} : vector<8x128xbf16>, vector<128x128xbf16>, vector<8x128xf32> -> vector<8x128xf32>
    %c4_30 = arith.constant 4 : index
    %c0_31 = arith.constant 0 : index
    %c0_32 = arith.constant 0 : index
    %56 = vector.load %arg5[%c4_30, %c0_31, %c0_32] : memref<5x1x128xf32, #tpu.memory_space<vmem>>, vector<1x1x128xf32>
    %57 = vector.shape_cast %56 : vector<1x1x128xf32> to vector<1x128xf32>
    %58 = vector.broadcast %57 : vector<1x128xf32> to vector<8x128xf32>
    %59 = arith.addf %55, %58 : vector<8x128xf32>
    %60 = arith.truncf %59 : vector<8x128xf32> to vector<8x128xbf16>
    %c0_33 = arith.constant 0 : index
    %c0_34 = arith.constant 0 : index
    %61 = vector.load %arg6[%c0_33, %c0_34] : memref<128x128xbf16, #tpu.memory_space<vmem>>, vector<128x128xbf16>
    %cst_35 = arith.constant dense<0.000000e+00> : vector<8x128xf32>
    %62 = tpu.matmul %60, %61, %cst_35 {dimension_numbers = #tpu.dot_dimension_numbers<[1], [0], [0], [1], [0, 0, 1, 1], [], []>} : vector<8x128xbf16>, vector<128x128xbf16>, vector<8x128xf32> -> vector<8x128xf32>
    %c0_36 = arith.constant 0 : index
    %c0_37 = arith.constant 0 : index
    %63 = vector.load %arg7[%c0_36, %c0_37] : memref<1x128xf32, #tpu.memory_space<vmem>>, vector<1x128xf32>
    %64 = vector.broadcast %63 : vector<1x128xf32> to vector<8x128xf32>
    %65 = arith.addf %62, %64 : vector<8x128xf32>
    %cst_38 = arith.constant dense<0xFF800000> : vector<8xf32>
    %66 = vector.multi_reduction <maximumf>, %65, %cst_38 [1] : vector<8x128xf32> to vector<8xf32>
    %67 = vector.shape_cast %66 : vector<8xf32> to vector<8x1xf32>
    %68 = vector.broadcast %67 : vector<8x1xf32> to vector<8x128xf32>
    %69 = arith.subf %65, %68 : vector<8x128xf32>
    %70 = math.exp %69 : vector<8x128xf32>
    %cst_39 = arith.constant dense<0.000000e+00> : vector<8xf32>
    %71 = vector.multi_reduction <add>, %70, %cst_39 [1] : vector<8x128xf32> to vector<8xf32>
    %72 = vector.shape_cast %71 : vector<8xf32> to vector<8x1xf32>
    %73 = tpu.reciprocal %72 : vector<8x1xf32> -> vector<8x1xf32>
    %74 = vector.broadcast %73 : vector<8x1xf32> to vector<8x128xf32>
    %75 = arith.mulf %70, %74 : vector<8x128xf32>
    %c0_40 = arith.constant 0 : index
    %c0_41 = arith.constant 0 : index
    %76 = vector.load %arg8[%c0_40, %c0_41] : memref<8x128xf32, #tpu.memory_space<vmem>>, vector<8x128xf32>
    tpu.vector_store %arg8[%c0_40, %c0_41], %75 {strides = array<i32>} : memref<8x128xf32, #tpu.memory_space<vmem>>, vector<8x128xf32>,
    return
  }
  func.func @transform_0(%arg0: i32) -> (i32, i32) {
    %c0_i32 = arith.constant 0 : i32
    %c0_i32_0 = arith.constant 0 : i32
    return %arg0, %c0_i32 : i32, i32
  }
  func.func @transform_1(%arg0: i32) -> (i32, i32) {
    %c0_i32 = arith.constant 0 : i32
    %c0_i32_0 = arith.constant 0 : i32
    %c0_i32_1 = arith.constant 0 : i32
    return %c0_i32, %c0_i32_0 : i32, i32
  }
  func.func @transform_2(%arg0: i32) -> (i32, i32) {
    %c0_i32 = arith.constant 0 : i32
    %c0_i32_0 = arith.constant 0 : i32
    %c0_i32_1 = arith.constant 0 : i32
    return %c0_i32, %c0_i32_0 : i32, i32
  }
  func.func @transform_3(%arg0: i32) -> (i32, i32, i32) {
    %c0_i32 = arith.constant 0 : i32
    %c0_i32_0 = arith.constant 0 : i32
    %c0_i32_1 = arith.constant 0 : i32
    %c0_i32_2 = arith.constant 0 : i32
    return %c0_i32, %c0_i32_0, %c0_i32_1 : i32, i32, i32
  }
  func.func @transform_4(%arg0: i32) -> (i32, i32, i32) {
    %c0_i32 = arith.constant 0 : i32
    %c0_i32_0 = arith.constant 0 : i32
    %c0_i32_1 = arith.constant 0 : i32
    %c0_i32_2 = arith.constant 0 : i32
    return %c0_i32, %c0_i32_0, %c0_i32_1 : i32, i32, i32
  }
  func.func @transform_5(%arg0: i32) -> (i32, i32) {
    %c0_i32 = arith.constant 0 : i32
    %c0_i32_0 = arith.constant 0 : i32
    %c0_i32_1 = arith.constant 0 : i32
    return %c0_i32, %c0_i32_0 : i32, i32
  }
  func.func @transform_6(%arg0: i32) -> (i32, i32) {
    %c0_i32 = arith.constant 0 : i32
    %c0_i32_0 = arith.constant 0 : i32
    %c0_i32_1 = arith.constant 0 : i32
    return %c0_i32, %c0_i32_0 : i32, i32
  }
  func.func @transform_7(%arg0: i32) -> (i32, i32) {
    %c0_i32 = arith.constant 0 : i32
    %c0_i32_0 = arith.constant 0 : i32
    return %arg0, %c0_i32 : i32, i32
  }
}

</mosaic_0001>

<llo_original>
// kernel: feedforward_forward.1
$region0: #{feedforward_forward.1}
  #allocation0 [shape = 'u32[]', space=smem, size = 0x4, offset = 0x4, fixed_abs, tag = 'smem constant byte address 0x4 - core index']
  #allocation1 [shape = 'u32[144,128]{1,0:T(1,128)}', space=vmem, size = 0x12000, scoped, tag = 'internal scratch']
  %s0 = inlined_call_operand.vmem [shape: f32[8,256], index: 0, kind: input, shape index: {}]
  %s1 = inlined_call_operand.vmem [shape: bf16[256,128], index: 1, kind: input, shape index: {}]
  %s2 = inlined_call_operand.vmem [shape: f32[1,128], index: 2, kind: input, shape index: {}]
  %s3 = inlined_call_operand.vmem [shape: bf16[5,128,128], index: 3, kind: input, shape index: {}]
  %s4 = inlined_call_operand.vmem [shape: f32[5,1,128], index: 4, kind: input, shape index: {}]
  %s5 = inlined_call_operand.vmem [shape: bf16[128,128], index: 5, kind: input, shape index: {}]
  %s6 = inlined_call_operand.vmem [shape: f32[1,128], index: 6, kind: input, shape index: {}]
  %s7 = inlined_call_operand.vmem [shape: f32[8,128], index: 7, kind: output, shape index: {}]
  %s8 = sld [smem:[#allocation0]]
  $region38: #{feedforward_forward.1} parent=0
    _
  %s10 = ssub.s32 1, %s8
  %s11 = scalar_select 0, %s10, %s8
  // Predicated region
  $region2: #{feedforward_forward.1} parent=0 // pred_check
    _
  $region3: #{feedforward_forward.1} parent=0 // pred_check_branch
    %13 = sbr.rel (0) target = $region5
  $region4: #{feedforward_forward.1} parent=0 // pred_region
    _
  $region5: #{feedforward_forward.1} parent=0 // pred_fallthru
    _
  // Predicated region
  $region6: #{feedforward_forward.1} parent=0 // pred_check
    _
  $region7: #{feedforward_forward.1} parent=0 // pred_check_branch
    %15 = sbr.rel (0) target = $region9
  $region8: #{feedforward_forward.1} parent=0 // pred_region
    _
  $region9: #{feedforward_forward.1} parent=0 // pred_fallthru
    _
  // Predicated region
  $region10: #{feedforward_forward.1} parent=0 // pred_check
    _
  $region11: #{feedforward_forward.1} parent=0 // pred_check_branch
    %17 = sbr.rel (0) target = $region13
  $region12: #{feedforward_forward.1} parent=0 // pred_region
    _
  $region13: #{feedforward_forward.1} parent=0 // pred_fallthru
    _
  // Predicated region
  $region14: #{feedforward_forward.1} parent=0 // pred_check
    _
  $region15: #{feedforward_forward.1} parent=0 // pred_check_branch
    %19 = sbr.rel (0) target = $region17
  $region16: #{feedforward_forward.1} parent=0 // pred_region
    _
  $region17: #{feedforward_forward.1} parent=0 // pred_fallthru
    _
  // Predicated region
  $region18: #{feedforward_forward.1} parent=0 // pred_check
    _
  $region19: #{feedforward_forward.1} parent=0 // pred_check_branch
    %21 = sbr.rel (0) target = $region21
  $region20: #{feedforward_forward.1} parent=0 // pred_region
    _
  $region21: #{feedforward_forward.1} parent=0 // pred_fallthru
    _
  // Predicated region
  $region22: #{feedforward_forward.1} parent=0 // pred_check
    _
  $region23: #{feedforward_forward.1} parent=0 // pred_check_branch
    %23 = sbr.rel (0) target = $region25
  $region24: #{feedforward_forward.1} parent=0 // pred_region
    _
  $region25: #{feedforward_forward.1} parent=0 // pred_fallthru
    _
  // Predicated region
  $region26: #{feedforward_forward.1} parent=0 // pred_check
    _
  $region27: #{feedforward_forward.1} parent=0 // pred_check_branch
    %25 = sbr.rel (0) target = $region29
  $region28: #{feedforward_forward.1} parent=0 // pred_region
    _
  $region29: #{feedforward_forward.1} parent=0 // pred_fallthru
    _
  %v27 = vld [vmem:[%s0] sm:$0xff]
  %v28 = vld [vmem:[%s0 + $0x8] sm:$0xff]
  %v29 = vpack.c.bf16 %v27, %v27
  %v30 = vpack.c.bf16 %v28, %v28
  %v31 = vld [vmem:[%s1] sm:$0xf]
  %v32 = vld [vmem:[%s1 + $0x4] sm:$0xf]
  %v33 = vld [vmem:[%s1 + $0x8] sm:$0xf]
  %v34 = vld [vmem:[%s1 + $0xc] sm:$0xf]
  %v35 = vld [vmem:[%s1 + $0x10] sm:$0xf]
  %v36 = vld [vmem:[%s1 + $0x14] sm:$0xf]
  %v37 = vld [vmem:[%s1 + $0x18] sm:$0xf]
  %v38 = vld [vmem:[%s1 + $0x1c] sm:$0xf]
  %v39 = vld [vmem:[%s1 + $0x20] sm:$0xf]
  %v40 = vld [vmem:[%s1 + $0x24] sm:$0xf]
  %v41 = vld [vmem:[%s1 + $0x28] sm:$0xf]
  %v42 = vld [vmem:[%s1 + $0x2c] sm:$0xf]
  %v43 = vld [vmem:[%s1 + $0x30] sm:$0xf]
  %v44 = vld [vmem:[%s1 + $0x34] sm:$0xf]
  %v45 = vld [vmem:[%s1 + $0x38] sm:$0xf]
  %v46 = vld [vmem:[%s1 + $0x3c] sm:$0xf]
  %v47 = vld [vmem:[%s1 + $0x40] sm:$0xf]
  %v48 = vld [vmem:[%s1 + $0x44] sm:$0xf]
  %v49 = vld [vmem:[%s1 + $0x48] sm:$0xf]
  %v50 = vld [vmem:[%s1 + $0x4c] sm:$0xf]
  %v51 = vld [vmem:[%s1 + $0x50] sm:$0xf]
  %v52 = vld [vmem:[%s1 + $0x54] sm:$0xf]
  %v53 = vld [vmem:[%s1 + $0x58] sm:$0xf]
  %v54 = vld [vmem:[%s1 + $0x5c] sm:$0xf]
  %v55 = vld [vmem:[%s1 + $0x60] sm:$0xf]
  %v56 = vld [vmem:[%s1 + $0x64] sm:$0xf]
  %v57 = vld [vmem:[%s1 + $0x68] sm:$0xf]
  %v58 = vld [vmem:[%s1 + $0x6c] sm:$0xf]
  %v59 = vld [vmem:[%s1 + $0x70] sm:$0xf]
  %v60 = vld [vmem:[%s1 + $0x74] sm:$0xf]
  %v61 = vld [vmem:[%s1 + $0x78] sm:$0xf]
  %v62 = vld [vmem:[%s1 + $0x7c] sm:$0xf]
  %v63 = vld [vmem:[%s2] sm:$0x1]
  %v65 = vlaneseq
  %v66 = vshrl.u32 %v65, 7
  %v67 = vsub.s32 0, %v66
  %v68 = vrot.slane %v63, %v67
  %v102 = vunpack.c.l.b16 %v31
  %v103 = vunpack.c.l.b16 %v32
  %v104 = vunpack.c.l.b16 %v33
  %v105 = vunpack.c.l.b16 %v34
  %v106 = vunpack.c.l.b16 %v35
  %v107 = vunpack.c.l.b16 %v36
  %v108 = vunpack.c.l.b16 %v37
  %v109 = vunpack.c.l.b16 %v38
  %v110 = vunpack.c.l.b16 %v39
  %v111 = vunpack.c.l.b16 %v40
  %v112 = vunpack.c.l.b16 %v41
  %v113 = vunpack.c.l.b16 %v42
  %v114 = vunpack.c.l.b16 %v43
  %v115 = vunpack.c.l.b16 %v44
  %v116 = vunpack.c.l.b16 %v45
  %v117 = vunpack.c.l.b16 %v46
  %v118 = vunpack.c.l.b16 %v47
  %v119 = vunpack.c.l.b16 %v48
  %v120 = vunpack.c.l.b16 %v49
  %v121 = vunpack.c.l.b16 %v50
  %v122 = vunpack.c.l.b16 %v51
  %v123 = vunpack.c.l.b16 %v52
  %v124 = vunpack.c.l.b16 %v53
  %v125 = vunpack.c.l.b16 %v54
  %v126 = vunpack.c.l.b16 %v55
  %v127 = vunpack.c.l.b16 %v56
  %v128 = vunpack.c.l.b16 %v57
  %v129 = vunpack.c.l.b16 %v58
  %v130 = vunpack.c.l.b16 %v59
  %v131 = vunpack.c.l.b16 %v60
  %v132 = vunpack.c.l.b16 %v61
  %v133 = vunpack.c.l.b16 %v62
  %v134 = vpack.c.b16 %v103, %v102
  %v135 = vpack.c.b16 %v105, %v104
  %v136 = vpack.c.b16 %v107, %v106
  %v137 = vpack.c.b16 %v109, %v108
  %v138 = vpack.c.b16 %v111, %v110
  %v139 = vpack.c.b16 %v113, %v112
  %v140 = vpack.c.b16 %v115, %v114
  %v141 = vpack.c.b16 %v117, %v116
  %v142 = vpack.c.b16 %v119, %v118
  %v143 = vpack.c.b16 %v121, %v120
  %v144 = vpack.c.b16 %v123, %v122
  %v145 = vpack.c.b16 %v125, %v124
  %v146 = vpack.c.b16 %v127, %v126
  %v147 = vpack.c.b16 %v129, %v128
  %v148 = vpack.c.b16 %v131, %v130
  %v149 = vpack.c.b16 %v133, %v132
  %166 = vmatprep.subr.bf16.mxu0 0
  %167 = vmatpush1.bf16.msra.mxu0 %v141
  %168 = vmatprep.subr.bf16.mxu0 0
  %169 = vmatpush1.bf16.msra.mxu0 %v140
  %170 = vmatprep.subr.bf16.mxu0 0
  %171 = vmatpush1.bf16.msra.mxu0 %v139
  %172 = vmatprep.subr.bf16.mxu0 0
  %173 = vmatpush1.bf16.msra.mxu0 %v138
  %174 = vmatprep.subr.bf16.mxu0 0
  %175 = vmatpush1.bf16.msra.mxu0 %v137
  %176 = vmatprep.subr.bf16.mxu0 0
  %177 = vmatpush1.bf16.msra.mxu0 %v136
  %178 = vmatprep.subr.bf16.mxu0 0
  %179 = vmatpush1.bf16.msra.mxu0 %v135
  %180 = vmatprep.subr.bf16.mxu0 0
  %181 = vmatpush1.bf16.msra.mxu0 %v134
  %182 = vmatprep.subr.bf16.mxu0 0
  %183 = vmatpush2.bf16.msra.mxu0 %v149
  %184 = vmatprep.subr.bf16.mxu0 0
  %185 = vmatpush2.bf16.msra.mxu0 %v148
  %186 = vmatprep.subr.bf16.mxu0 0
  %187 = vmatpush2.bf16.msra.mxu0 %v147
  %188 = vmatprep.subr.bf16.mxu0 0
  %189 = vmatpush2.bf16.msra.mxu0 %v146
  %190 = vmatprep.subr.bf16.mxu0 0
  %191 = vmatpush2.bf16.msra.mxu0 %v145
  %192 = vmatprep.subr.bf16.mxu0 0
  %193 = vmatpush2.bf16.msra.mxu0 %v144
  %194 = vmatprep.subr.bf16.mxu0 0
  %195 = vmatpush2.bf16.msra.mxu0 %v143
  %196 = vmatprep.subr.bf16.mxu0 0
  %197 = vmatpush2.bf16.msra.mxu0 %v142
  %198 = vmatprep.mubr.bf16.mxu0 %v30
  %199 = vmatmul.mubr.bf16.gmra.mxu0 %v29
  %v200 = vpop.f32.mrf.mxu0
  %v201 = vadd.f32 %v68, %v200
  %v202 = vpop.f32.mrf.mxu0
  %v203 = vpop.f32.mrf.mxu0
  %v204 = vpop.f32.mrf.mxu0
  %205 = vdwg.mxu0
  %v206 = vpack.c.bf16 %v201, %v201
  %v207 = vld [vmem:[%s3] sm:$0xf]
  %v208 = vld [vmem:[%s3 + $0x4] sm:$0xf]
  %v209 = vld [vmem:[%s3 + $0x8] sm:$0xf]
  %v210 = vld [vmem:[%s3 + $0xc] sm:$0xf]
  %v211 = vld [vmem:[%s3 + $0x10] sm:$0xf]
  %v212 = vld [vmem:[%s3 + $0x14] sm:$0xf]
  %v213 = vld [vmem:[%s3 + $0x18] sm:$0xf]
  %v214 = vld [vmem:[%s3 + $0x1c] sm:$0xf]
  %v215 = vld [vmem:[%s3 + $0x20] sm:$0xf]
  %v216 = vld [vmem:[%s3 + $0x24] sm:$0xf]
  %v217 = vld [vmem:[%s3 + $0x28] sm:$0xf]
  %v218 = vld [vmem:[%s3 + $0x2c] sm:$0xf]
  %v219 = vld [vmem:[%s3 + $0x30] sm:$0xf]
  %v220 = vld [vmem:[%s3 + $0x34] sm:$0xf]
  %v221 = vld [vmem:[%s3 + $0x38] sm:$0xf]
  %v222 = vld [vmem:[%s3 + $0x3c] sm:$0xf]
  %v223 = vld [vmem:[%s4] sm:$0x1]
  %v225 = vlaneseq
  %v226 = vshrl.u32 %v225, 7
  %v227 = vsub.s32 0, %v226
  %v228 = vrot.slane %v223, %v227
  %v246 = vunpack.c.l.b16 %v207
  %v247 = vunpack.c.l.b16 %v208
  %v248 = vunpack.c.l.b16 %v209
  %v249 = vunpack.c.l.b16 %v210
  %v250 = vunpack.c.l.b16 %v211
  %v251 = vunpack.c.l.b16 %v212
  %v252 = vunpack.c.l.b16 %v213
  %v253 = vunpack.c.l.b16 %v214
  %v254 = vunpack.c.l.b16 %v215
  %v255 = vunpack.c.l.b16 %v216
  %v256 = vunpack.c.l.b16 %v217
  %v257 = vunpack.c.l.b16 %v218
  %v258 = vunpack.c.l.b16 %v219
  %v259 = vunpack.c.l.b16 %v220
  %v260 = vunpack.c.l.b16 %v221
  %v261 = vunpack.c.l.b16 %v222
  %v262 = vpack.c.b16 %v247, %v246
  %v263 = vpack.c.b16 %v249, %v248
  %v264 = vpack.c.b16 %v251, %v250
  %v265 = vpack.c.b16 %v253, %v252
  %v266 = vpack.c.b16 %v255, %v254
  %v267 = vpack.c.b16 %v257, %v256
  %v268 = vpack.c.b16 %v259, %v258
  %v269 = vpack.c.b16 %v261, %v260
  %278 = vmatprep.subr.bf16.mxu0 0
  %279 = vmatpush1.bf16.msra.mxu0 %v269
  %280 = vmatprep.subr.bf16.mxu0 0
  %281 = vmatpush1.bf16.msra.mxu0 %v268
  %282 = vmatprep.subr.bf16.mxu0 0
  %283 = vmatpush1.bf16.msra.mxu0 %v267
  %284 = vmatprep.subr.bf16.mxu0 0
  %285 = vmatpush1.bf16.msra.mxu0 %v266
  %286 = vmatprep.subr.bf16.mxu0 0
  %287 = vmatpush1.bf16.msra.mxu0 %v265
  %288 = vmatprep.subr.bf16.mxu0 0
  %289 = vmatpush1.bf16.msra.mxu0 %v264
  %290 = vmatprep.subr.bf16.mxu0 0
  %291 = vmatpush1.bf16.msra.mxu0 %v263
  %292 = vmatprep.subr.bf16.mxu0 0
  %293 = vmatpush1.bf16.msra.mxu0 %v262
  %294 = vmatprep.subr.bf16.mxu0 0
  %295 = vmatpush2.bf16.msra.mxu0 0
  %296 = vmatprep.subr.bf16.mxu0 0
  %297 = vmatpush2.bf16.msra.mxu0 0
  %298 = vmatprep.subr.bf16.mxu0 0
  %299 = vmatpush2.bf16.msra.mxu0 0
  %300 = vmatprep.subr.bf16.mxu0 0
  %301 = vmatpush2.bf16.msra.mxu0 0
  %302 = vmatprep.subr.bf16.mxu0 0
  %303 = vmatpush2.bf16.msra.mxu0 0
  %304 = vmatprep.subr.bf16.mxu0 0
  %305 = vmatpush2.bf16.msra.mxu0 0
  %306 = vmatprep.subr.bf16.mxu0 0
  %307 = vmatpush2.bf16.msra.mxu0 0
  %308 = vmatprep.subr.bf16.mxu0 0
  %309 = vmatpush2.bf16.msra.mxu0 0
  %310 = vmatprep.mubr.bf16.mxu0 0
  %311 = vmatmul.mubr.bf16.gmra.mxu0 %v206
  %v312 = vpop.f32.mrf.mxu0
  %v313 = vadd.f32 %v228, %v312
  %v314 = vpop.f32.mrf.mxu0
  %v315 = vpop.f32.mrf.mxu0
  %v316 = vpop.f32.mrf.mxu0
  %317 = vdwg.mxu0
  %v318 = vpack.c.bf16 %v313, %v313
  %s319 = scalar_lea.vmem %s3, 64
  %v320 = vld [vmem:[%s319] sm:$0xf]
  %v321 = vld [vmem:[%s319 + $0x4] sm:$0xf]
  %v322 = vld [vmem:[%s319 + $0x8] sm:$0xf]
  %v323 = vld [vmem:[%s319 + $0xc] sm:$0xf]
  %v324 = vld [vmem:[%s319 + $0x10] sm:$0xf]
  %v325 = vld [vmem:[%s319 + $0x14] sm:$0xf]
  %v326 = vld [vmem:[%s319 + $0x18] sm:$0xf]
  %v327 = vld [vmem:[%s319 + $0x1c] sm:$0xf]
  %v328 = vld [vmem:[%s319 + $0x20] sm:$0xf]
  %v329 = vld [vmem:[%s319 + $0x24] sm:$0xf]
  %v330 = vld [vmem:[%s319 + $0x28] sm:$0xf]
  %v331 = vld [vmem:[%s319 + $0x2c] sm:$0xf]
  %v332 = vld [vmem:[%s319 + $0x30] sm:$0xf]
  %v333 = vld [vmem:[%s319 + $0x34] sm:$0xf]
  %v334 = vld [vmem:[%s319 + $0x38] sm:$0xf]
  %v335 = vld [vmem:[%s319 + $0x3c] sm:$0xf]
  %s336 = scalar_lea.vmem %s4, 1
  %v337 = vld [vmem:[%s336] sm:$0x1]
  %v339 = vlaneseq
  %v340 = vshrl.u32 %v339, 7
  %v341 = vsub.s32 0, %v340
  %v342 = vrot.slane %v337, %v341
  %v360 = vunpack.c.l.b16 %v320
  %v361 = vunpack.c.l.b16 %v321
  %v362 = vunpack.c.l.b16 %v322
  %v363 = vunpack.c.l.b16 %v323
  %v364 = vunpack.c.l.b16 %v324
  %v365 = vunpack.c.l.b16 %v325
  %v366 = vunpack.c.l.b16 %v326
  %v367 = vunpack.c.l.b16 %v327
  %v368 = vunpack.c.l.b16 %v328
  %v369 = vunpack.c.l.b16 %v329
  %v370 = vunpack.c.l.b16 %v330
  %v371 = vunpack.c.l.b16 %v331
  %v372 = vunpack.c.l.b16 %v332
  %v373 = vunpack.c.l.b16 %v333
  %v374 = vunpack.c.l.b16 %v334
  %v375 = vunpack.c.l.b16 %v335
  %v376 = vpack.c.b16 %v361, %v360
  %v377 = vpack.c.b16 %v363, %v362
  %v378 = vpack.c.b16 %v365, %v364
  %v379 = vpack.c.b16 %v367, %v366
  %v380 = vpack.c.b16 %v369, %v368
  %v381 = vpack.c.b16 %v371, %v370
  %v382 = vpack.c.b16 %v373, %v372
  %v383 = vpack.c.b16 %v375, %v374
  %392 = vmatprep.subr.bf16.mxu0 0
  %393 = vmatpush1.bf16.msra.mxu0 %v383
  %394 = vmatprep.subr.bf16.mxu0 0
  %395 = vmatpush1.bf16.msra.mxu0 %v382
  %396 = vmatprep.subr.bf16.mxu0 0
  %397 = vmatpush1.bf16.msra.mxu0 %v381
  %398 = vmatprep.subr.bf16.mxu0 0
  %399 = vmatpush1.bf16.msra.mxu0 %v380
  %400 = vmatprep.subr.bf16.mxu0 0
  %401 = vmatpush1.bf16.msra.mxu0 %v379
  %402 = vmatprep.subr.bf16.mxu0 0
  %403 = vmatpush1.bf16.msra.mxu0 %v378
  %404 = vmatprep.subr.bf16.mxu0 0
  %405 = vmatpush1.bf16.msra.mxu0 %v377
  %406 = vmatprep.subr.bf16.mxu0 0
  %407 = vmatpush1.bf16.msra.mxu0 %v376
  %408 = vmatprep.subr.bf16.mxu0 0
  %409 = vmatpush2.bf16.msra.mxu0 0
  %410 = vmatprep.subr.bf16.mxu0 0
  %411 = vmatpush2.bf16.msra.mxu0 0
  %412 = vmatprep.subr.bf16.mxu0 0
  %413 = vmatpush2.bf16.msra.mxu0 0
  %414 = vmatprep.subr.bf16.mxu0 0
  %415 = vmatpush2.bf16.msra.mxu0 0
  %416 = vmatprep.subr.bf16.mxu0 0
  %417 = vmatpush2.bf16.msra.mxu0 0
  %418 = vmatprep.subr.bf16.mxu0 0
  %419 = vmatpush2.bf16.msra.mxu0 0
  %420 = vmatprep.subr.bf16.mxu0 0
  %421 = vmatpush2.bf16.msra.mxu0 0
  %422 = vmatprep.subr.bf16.mxu0 0
  %423 = vmatpush2.bf16.msra.mxu0 0
  %424 = vmatprep.mubr.bf16.mxu0 0
  %425 = vmatmul.mubr.bf16.gmra.mxu0 %v318
  %v426 = vpop.f32.mrf.mxu0
  %v427 = vadd.f32 %v342, %v426
  %v428 = vpop.f32.mrf.mxu0
  %v429 = vpop.f32.mrf.mxu0
  %v430 = vpop.f32.mrf.mxu0
  %431 = vdwg.mxu0
  %v432 = vpack.c.bf16 %v427, %v427
  %s433 = scalar_lea.vmem %s3, 128
  %v434 = vld [vmem:[%s433] sm:$0xf]
  %v435 = vld [vmem:[%s433 + $0x4] sm:$0xf]
  %v436 = vld [vmem:[%s433 + $0x8] sm:$0xf]
  %v437 = vld [vmem:[%s433 + $0xc] sm:$0xf]
  %v438 = vld [vmem:[%s433 + $0x10] sm:$0xf]
  %v439 = vld [vmem:[%s433 + $0x14] sm:$0xf]
  %v440 = vld [vmem:[%s433 + $0x18] sm:$0xf]
  %v441 = vld [vmem:[%s433 + $0x1c] sm:$0xf]
  %v442 = vld [vmem:[%s433 + $0x20] sm:$0xf]
  %v443 = vld [vmem:[%s433 + $0x24] sm:$0xf]
  %v444 = vld [vmem:[%s433 + $0x28] sm:$0xf]
  %v445 = vld [vmem:[%s433 + $0x2c] sm:$0xf]
  %v446 = vld [vmem:[%s433 + $0x30] sm:$0xf]
  %v447 = vld [vmem:[%s433 + $0x34] sm:$0xf]
  %v448 = vld [vmem:[%s433 + $0x38] sm:$0xf]
  %v449 = vld [vmem:[%s433 + $0x3c] sm:$0xf]
  %s450 = scalar_lea.vmem %s4, 2
  %v451 = vld [vmem:[%s450] sm:$0x1]
  %v453 = vlaneseq
  %v454 = vshrl.u32 %v453, 7
  %v455 = vsub.s32 0, %v454
  %v456 = vrot.slane %v451, %v455
  %v474 = vunpack.c.l.b16 %v434
  %v475 = vunpack.c.l.b16 %v435
  %v476 = vunpack.c.l.b16 %v436
  %v477 = vunpack.c.l.b16 %v437
  %v478 = vunpack.c.l.b16 %v438
  %v479 = vunpack.c.l.b16 %v439
  %v480 = vunpack.c.l.b16 %v440
  %v481 = vunpack.c.l.b16 %v441
  %v482 = vunpack.c.l.b16 %v442
  %v483 = vunpack.c.l.b16 %v443
  %v484 = vunpack.c.l.b16 %v444
  %v485 = vunpack.c.l.b16 %v445
  %v486 = vunpack.c.l.b16 %v446
  %v487 = vunpack.c.l.b16 %v447
  %v488 = vunpack.c.l.b16 %v448
  %v489 = vunpack.c.l.b16 %v449
  %v490 = vpack.c.b16 %v475, %v474
  %v491 = vpack.c.b16 %v477, %v476
  %v492 = vpack.c.b16 %v479, %v478
  %v493 = vpack.c.b16 %v481, %v480
  %v494 = vpack.c.b16 %v483, %v482
  %v495 = vpack.c.b16 %v485, %v484
  %v496 = vpack.c.b16 %v487, %v486
  %v497 = vpack.c.b16 %v489, %v488
  %506 = vmatprep.subr.bf16.mxu0 0
  %507 = vmatpush1.bf16.msra.mxu0 %v497
  %508 = vmatprep.subr.bf16.mxu0 0
  %509 = vmatpush1.bf16.msra.mxu0 %v496
  %510 = vmatprep.subr.bf16.mxu0 0
  %511 = vmatpush1.bf16.msra.mxu0 %v495
  %512 = vmatprep.subr.bf16.mxu0 0
  %513 = vmatpush1.bf16.msra.mxu0 %v494
  %514 = vmatprep.subr.bf16.mxu0 0
  %515 = vmatpush1.bf16.msra.mxu0 %v493
  %516 = vmatprep.subr.bf16.mxu0 0
  %517 = vmatpush1.bf16.msra.mxu0 %v492
  %518 = vmatprep.subr.bf16.mxu0 0
  %519 = vmatpush1.bf16.msra.mxu0 %v491
  %520 = vmatprep.subr.bf16.mxu0 0
  %521 = vmatpush1.bf16.msra.mxu0 %v490
  %522 = vmatprep.subr.bf16.mxu0 0
  %523 = vmatpush2.bf16.msra.mxu0 0
  %524 = vmatprep.subr.bf16.mxu0 0
  %525 = vmatpush2.bf16.msra.mxu0 0
  %526 = vmatprep.subr.bf16.mxu0 0
  %527 = vmatpush2.bf16.msra.mxu0 0
  %528 = vmatprep.subr.bf16.mxu0 0
  %529 = vmatpush2.bf16.msra.mxu0 0
  %530 = vmatprep.subr.bf16.mxu0 0
  %531 = vmatpush2.bf16.msra.mxu0 0
  %532 = vmatprep.subr.bf16.mxu0 0
  %533 = vmatpush2.bf16.msra.mxu0 0
  %534 = vmatprep.subr.bf16.mxu0 0
  %535 = vmatpush2.bf16.msra.mxu0 0
  %536 = vmatprep.subr.bf16.mxu0 0
  %537 = vmatpush2.bf16.msra.mxu0 0
  %538 = vmatprep.mubr.bf16.mxu0 0
  %539 = vmatmul.mubr.bf16.gmra.mxu0 %v432
  %v540 = vpop.f32.mrf.mxu0
  %v541 = vadd.f32 %v456, %v540
  %v542 = vpop.f32.mrf.mxu0
  %v543 = vpop.f32.mrf.mxu0
  %v544 = vpop.f32.mrf.mxu0
  %545 = vdwg.mxu0
  %v546 = vpack.c.bf16 %v541, %v541
  %s547 = scalar_lea.vmem %s3, 192
  %v548 = vld [vmem:[%s547] sm:$0xf]
  %v549 = vld [vmem:[%s547 + $0x4] sm:$0xf]
  %v550 = vld [vmem:[%s547 + $0x8] sm:$0xf]
  %v551 = vld [vmem:[%s547 + $0xc] sm:$0xf]
  %v552 = vld [vmem:[%s547 + $0x10] sm:$0xf]
  %v553 = vld [vmem:[%s547 + $0x14] sm:$0xf]
  %v554 = vld [vmem:[%s547 + $0x18] sm:$0xf]
  %v555 = vld [vmem:[%s547 + $0x1c] sm:$0xf]
  %v556 = vld [vmem:[%s547 + $0x20] sm:$0xf]
  %v557 = vld [vmem:[%s547 + $0x24] sm:$0xf]
  %v558 = vld [vmem:[%s547 + $0x28] sm:$0xf]
  %v559 = vld [vmem:[%s547 + $0x2c] sm:$0xf]
  %v560 = vld [vmem:[%s547 + $0x30] sm:$0xf]
  %v561 = vld [vmem:[%s547 + $0x34] sm:$0xf]
  %v562 = vld [vmem:[%s547 + $0x38] sm:$0xf]
  %v563 = vld [vmem:[%s547 + $0x3c] sm:$0xf]
  %s564 = scalar_lea.vmem %s4, 3
  %v565 = vld [vmem:[%s564] sm:$0x1]
  %v567 = vlaneseq
  %v568 = vshrl.u32 %v567, 7
  %v569 = vsub.s32 0, %v568
  %v570 = vrot.slane %v565, %v569
  %v588 = vunpack.c.l.b16 %v548
  %v589 = vunpack.c.l.b16 %v549
  %v590 = vunpack.c.l.b16 %v550
  %v591 = vunpack.c.l.b16 %v551
  %v592 = vunpack.c.l.b16 %v552
  %v593 = vunpack.c.l.b16 %v553
  %v594 = vunpack.c.l.b16 %v554
  %v595 = vunpack.c.l.b16 %v555
  %v596 = vunpack.c.l.b16 %v556
  %v597 = vunpack.c.l.b16 %v557
  %v598 = vunpack.c.l.b16 %v558
  %v599 = vunpack.c.l.b16 %v559
  %v600 = vunpack.c.l.b16 %v560
  %v601 = vunpack.c.l.b16 %v561
  %v602 = vunpack.c.l.b16 %v562
  %v603 = vunpack.c.l.b16 %v563
  %v604 = vpack.c.b16 %v589, %v588
  %v605 = vpack.c.b16 %v591, %v590
  %v606 = vpack.c.b16 %v593, %v592
  %v607 = vpack.c.b16 %v595, %v594
  %v608 = vpack.c.b16 %v597, %v596
  %v609 = vpack.c.b16 %v599, %v598
  %v610 = vpack.c.b16 %v601, %v600
  %v611 = vpack.c.b16 %v603, %v602
  %620 = vmatprep.subr.bf16.mxu0 0
  %621 = vmatpush1.bf16.msra.mxu0 %v611
  %622 = vmatprep.subr.bf16.mxu0 0
  %623 = vmatpush1.bf16.msra.mxu0 %v610
  %624 = vmatprep.subr.bf16.mxu0 0
  %625 = vmatpush1.bf16.msra.mxu0 %v609
  %626 = vmatprep.subr.bf16.mxu0 0
  %627 = vmatpush1.bf16.msra.mxu0 %v608
  %628 = vmatprep.subr.bf16.mxu0 0
  %629 = vmatpush1.bf16.msra.mxu0 %v607
  %630 = vmatprep.subr.bf16.mxu0 0
  %631 = vmatpush1.bf16.msra.mxu0 %v606
  %632 = vmatprep.subr.bf16.mxu0 0
  %633 = vmatpush1.bf16.msra.mxu0 %v605
  %634 = vmatprep.subr.bf16.mxu0 0
  %635 = vmatpush1.bf16.msra.mxu0 %v604
  %636 = vmatprep.subr.bf16.mxu0 0
  %637 = vmatpush2.bf16.msra.mxu0 0
  %638 = vmatprep.subr.bf16.mxu0 0
  %639 = vmatpush2.bf16.msra.mxu0 0
  %640 = vmatprep.subr.bf16.mxu0 0
  %641 = vmatpush2.bf16.msra.mxu0 0
  %642 = vmatprep.subr.bf16.mxu0 0
  %643 = vmatpush2.bf16.msra.mxu0 0
  %644 = vmatprep.subr.bf16.mxu0 0
  %645 = vmatpush2.bf16.msra.mxu0 0
  %646 = vmatprep.subr.bf16.mxu0 0
  %647 = vmatpush2.bf16.msra.mxu0 0
  %648 = vmatprep.subr.bf16.mxu0 0
  %649 = vmatpush2.bf16.msra.mxu0 0
  %650 = vmatprep.subr.bf16.mxu0 0
  %651 = vmatpush2.bf16.msra.mxu0 0
  %652 = vmatprep.mubr.bf16.mxu0 0
  %653 = vmatmul.mubr.bf16.gmra.mxu0 %v546
  %v654 = vpop.f32.mrf.mxu0
  %v655 = vadd.f32 %v570, %v654
  %v656 = vpop.f32.mrf.mxu0
  %v657 = vpop.f32.mrf.mxu0
  %v658 = vpop.f32.mrf.mxu0
  %659 = vdwg.mxu0
  %v660 = vpack.c.bf16 %v655, %v655
  %s661 = scalar_lea.vmem %s3, 256
  %v662 = vld [vmem:[%s661] sm:$0xf]
  %v663 = vld [vmem:[%s661 + $0x4] sm:$0xf]
  %v664 = vld [vmem:[%s661 + $0x8] sm:$0xf]
  %v665 = vld [vmem:[%s661 + $0xc] sm:$0xf]
  %v666 = vld [vmem:[%s661 + $0x10] sm:$0xf]
  %v667 = vld [vmem:[%s661 + $0x14] sm:$0xf]
  %v668 = vld [vmem:[%s661 + $0x18] sm:$0xf]
  %v669 = vld [vmem:[%s661 + $0x1c] sm:$0xf]
  %v670 = vld [vmem:[%s661 + $0x20] sm:$0xf]
  %v671 = vld [vmem:[%s661 + $0x24] sm:$0xf]
  %v672 = vld [vmem:[%s661 + $0x28] sm:$0xf]
  %v673 = vld [vmem:[%s661 + $0x2c] sm:$0xf]
  %v674 = vld [vmem:[%s661 + $0x30] sm:$0xf]
  %v675 = vld [vmem:[%s661 + $0x34] sm:$0xf]
  %v676 = vld [vmem:[%s661 + $0x38] sm:$0xf]
  %v677 = vld [vmem:[%s661 + $0x3c] sm:$0xf]
  %s678 = scalar_lea.vmem %s4, 4
  %v679 = vld [vmem:[%s678] sm:$0x1]
  %v681 = vlaneseq
  %v682 = vshrl.u32 %v681, 7
  %v683 = vsub.s32 0, %v682
  %v684 = vrot.slane %v679, %v683
  %v702 = vunpack.c.l.b16 %v662
  %v703 = vunpack.c.l.b16 %v663
  %v704 = vunpack.c.l.b16 %v664
  %v705 = vunpack.c.l.b16 %v665
  %v706 = vunpack.c.l.b16 %v666
  %v707 = vunpack.c.l.b16 %v667
  %v708 = vunpack.c.l.b16 %v668
  %v709 = vunpack.c.l.b16 %v669
  %v710 = vunpack.c.l.b16 %v670
  %v711 = vunpack.c.l.b16 %v671
  %v712 = vunpack.c.l.b16 %v672
  %v713 = vunpack.c.l.b16 %v673
  %v714 = vunpack.c.l.b16 %v674
  %v715 = vunpack.c.l.b16 %v675
  %v716 = vunpack.c.l.b16 %v676
  %v717 = vunpack.c.l.b16 %v677
  %v718 = vpack.c.b16 %v703, %v702
  %v719 = vpack.c.b16 %v705, %v704
  %v720 = vpack.c.b16 %v707, %v706
  %v721 = vpack.c.b16 %v709, %v708
  %v722 = vpack.c.b16 %v711, %v710
  %v723 = vpack.c.b16 %v713, %v712
  %v724 = vpack.c.b16 %v715, %v714
  %v725 = vpack.c.b16 %v717, %v716
  %734 = vmatprep.subr.bf16.mxu0 0
  %735 = vmatpush1.bf16.msra.mxu0 %v725
  %736 = vmatprep.subr.bf16.mxu0 0
  %737 = vmatpush1.bf16.msra.mxu0 %v724
  %738 = vmatprep.subr.bf16.mxu0 0
  %739 = vmatpush1.bf16.msra.mxu0 %v723
  %740 = vmatprep.subr.bf16.mxu0 0
  %741 = vmatpush1.bf16.msra.mxu0 %v722
  %742 = vmatprep.subr.bf16.mxu0 0
  %743 = vmatpush1.bf16.msra.mxu0 %v721
  %744 = vmatprep.subr.bf16.mxu0 0
  %745 = vmatpush1.bf16.msra.mxu0 %v720
  %746 = vmatprep.subr.bf16.mxu0 0
  %747 = vmatpush1.bf16.msra.mxu0 %v719
  %748 = vmatprep.subr.bf16.mxu0 0
  %749 = vmatpush1.bf16.msra.mxu0 %v718
  %750 = vmatprep.subr.bf16.mxu0 0
  %751 = vmatpush2.bf16.msra.mxu0 0
  %752 = vmatprep.subr.bf16.mxu0 0
  %753 = vmatpush2.bf16.msra.mxu0 0
  %754 = vmatprep.subr.bf16.mxu0 0
  %755 = vmatpush2.bf16.msra.mxu0 0
  %756 = vmatprep.subr.bf16.mxu0 0
  %757 = vmatpush2.bf16.msra.mxu0 0
  %758 = vmatprep.subr.bf16.mxu0 0
  %759 = vmatpush2.bf16.msra.mxu0 0
  %760 = vmatprep.subr.bf16.mxu0 0
  %761 = vmatpush2.bf16.msra.mxu0 0
  %762 = vmatprep.subr.bf16.mxu0 0
  %763 = vmatpush2.bf16.msra.mxu0 0
  %764 = vmatprep.subr.bf16.mxu0 0
  %765 = vmatpush2.bf16.msra.mxu0 0
  %766 = vmatprep.mubr.bf16.mxu0 0
  %767 = vmatmul.mubr.bf16.gmra.mxu0 %v660
  %v768 = vpop.f32.mrf.mxu0
  %v769 = vadd.f32 %v684, %v768
  %v770 = vpop.f32.mrf.mxu0
  %v771 = vpop.f32.mrf.mxu0
  %v772 = vpop.f32.mrf.mxu0
  %773 = vdwg.mxu0
  %v774 = vpack.c.bf16 %v769, %v769
  %v775 = vld [vmem:[%s5] sm:$0xf]
  %v776 = vld [vmem:[%s5 + $0x4] sm:$0xf]
  %v777 = vld [vmem:[%s5 + $0x8] sm:$0xf]
  %v778 = vld [vmem:[%s5 + $0xc] sm:$0xf]
  %v779 = vld [vmem:[%s5 + $0x10] sm:$0xf]
  %v780 = vld [vmem:[%s5 + $0x14] sm:$0xf]
  %v781 = vld [vmem:[%s5 + $0x18] sm:$0xf]
  %v782 = vld [vmem:[%s5 + $0x1c] sm:$0xf]
  %v783 = vld [vmem:[%s5 + $0x20] sm:$0xf]
  %v784 = vld [vmem:[%s5 + $0x24] sm:$0xf]
  %v785 = vld [vmem:[%s5 + $0x28] sm:$0xf]
  %v786 = vld [vmem:[%s5 + $0x2c] sm:$0xf]
  %v787 = vld [vmem:[%s5 + $0x30] sm:$0xf]
  %v788 = vld [vmem:[%s5 + $0x34] sm:$0xf]
  %v789 = vld [vmem:[%s5 + $0x38] sm:$0xf]
  %v790 = vld [vmem:[%s5 + $0x3c] sm:$0xf]
  %v791 = vld [vmem:[%s6] sm:$0x1]
  %v793 = vlaneseq
  %v794 = vshrl.u32 %v793, 7
  %v795 = vsub.s32 0, %v794
  %v796 = vrot.slane %v791, %v795
  %v814 = vunpack.c.l.b16 %v775
  %v815 = vunpack.c.l.b16 %v776
  %v816 = vunpack.c.l.b16 %v777
  %v817 = vunpack.c.l.b16 %v778
  %v818 = vunpack.c.l.b16 %v779
  %v819 = vunpack.c.l.b16 %v780
  %v820 = vunpack.c.l.b16 %v781
  %v821 = vunpack.c.l.b16 %v782
  %v822 = vunpack.c.l.b16 %v783
  %v823 = vunpack.c.l.b16 %v784
  %v824 = vunpack.c.l.b16 %v785
  %v825 = vunpack.c.l.b16 %v786
  %v826 = vunpack.c.l.b16 %v787
  %v827 = vunpack.c.l.b16 %v788
  %v828 = vunpack.c.l.b16 %v789
  %v829 = vunpack.c.l.b16 %v790
  %v830 = vpack.c.b16 %v815, %v814
  %v831 = vpack.c.b16 %v817, %v816
  %v832 = vpack.c.b16 %v819, %v818
  %v833 = vpack.c.b16 %v821, %v820
  %v834 = vpack.c.b16 %v823, %v822
  %v835 = vpack.c.b16 %v825, %v824
  %v836 = vpack.c.b16 %v827, %v826
  %v837 = vpack.c.b16 %v829, %v828
  %846 = vmatprep.subr.bf16.mxu0 0
  %847 = vmatpush1.bf16.msra.mxu0 %v837
  %848 = vmatprep.subr.bf16.mxu0 0
  %849 = vmatpush1.bf16.msra.mxu0 %v836
  %850 = vmatprep.subr.bf16.mxu0 0
  %851 = vmatpush1.bf16.msra.mxu0 %v835
  %852 = vmatprep.subr.bf16.mxu0 0
  %853 = vmatpush1.bf16.msra.mxu0 %v834
  %854 = vmatprep.subr.bf16.mxu0 0
  %855 = vmatpush1.bf16.msra.mxu0 %v833
  %856 = vmatprep.subr.bf16.mxu0 0
  %857 = vmatpush1.bf16.msra.mxu0 %v832
  %858 = vmatprep.subr.bf16.mxu0 0
  %859 = vmatpush1.bf16.msra.mxu0 %v831
  %860 = vmatprep.subr.bf16.mxu0 0
  %861 = vmatpush1.bf16.msra.mxu0 %v830
  %862 = vmatprep.subr.bf16.mxu0 0
  %863 = vmatpush2.bf16.msra.mxu0 0
  %864 = vmatprep.subr.bf16.mxu0 0
  %865 = vmatpush2.bf16.msra.mxu0 0
  %866 = vmatprep.subr.bf16.mxu0 0
  %867 = vmatpush2.bf16.msra.mxu0 0
  %868 = vmatprep.subr.bf16.mxu0 0
  %869 = vmatpush2.bf16.msra.mxu0 0
  %870 = vmatprep.subr.bf16.mxu0 0
  %871 = vmatpush2.bf16.msra.mxu0 0
  %872 = vmatprep.subr.bf16.mxu0 0
  %873 = vmatpush2.bf16.msra.mxu0 0
  %874 = vmatprep.subr.bf16.mxu0 0
  %875 = vmatpush2.bf16.msra.mxu0 0
  %876 = vmatprep.subr.bf16.mxu0 0
  %877 = vmatpush2.bf16.msra.mxu0 0
  %878 = vmatprep.mubr.bf16.mxu0 0
  %879 = vmatmul.mubr.bf16.gmra.mxu0 %v774
  %v880 = vpop.f32.mrf.mxu0
  %v881 = vadd.f32 %v796, %v880
  %v882 = vpop.f32.mrf.mxu0
  %v883 = vpop.f32.mrf.mxu0
  %v884 = vpop.f32.mrf.mxu0
  %885 = vdwg.mxu0
  %886 = vmax.xlane.f32.xlu0 %v881
  %v887 = vpop.xlane.xlu0 %886
  %v888 = vsub.f32 %v881, %v887
  %v889 = vmul.f32 %v888, 1.442695
  %v890 = vpow.pop %v889
  %891 = vadd.xlane.f32.xlu0 %v890
  %v892 = vpop.xlane.xlu0 %891
  %v893 = vrcp.pop %v892
  %v894 = vmul.f32 %v890, %v893
  %895 = vst [vmem:[%s7] sm:$0xff] %v894
  // Predicated region
  $region30: #{feedforward_forward.1} parent=0 // pred_check
    _
  $region31: #{feedforward_forward.1} parent=0 // pred_check_branch
    %897 = sbr.rel (0) target = $region33
  $region32: #{feedforward_forward.1} parent=0 // pred_region
    _
  $region33: #{feedforward_forward.1} parent=0 // pred_fallthru
    _
  // Predicated region
  $region34: #{feedforward_forward.1} parent=0 // pred_check
    _
  $region35: #{feedforward_forward.1} parent=0 // pred_check_branch
    %899 = sbr.rel (0) target = $region37
  $region36: #{feedforward_forward.1} parent=0 // pred_region
    _
  $region37: #{feedforward_forward.1} parent=0 // pred_fallthru
    _

</llo_original>
